<compile_context>
chip_gen: v6e
topology: v6e:2x2x1
jax: 0.10.0
libtpu: 0.0.40
codegen_flags: <defaults>
</compile_context>

<pallas_src>
import functools

import jax
import jax.numpy as jnp
from jax.experimental import pallas as pl
from jax.experimental.pallas import tpu as pltpu

LANE = 128
SUB = 8
TARGET_BLOCK_ROWS = 4096   # 4096 x 128 f32 = 2 MiB per operand per buffer
NUM_PARTS = 2              # leading "parallel" grid axis (v7x has 2 TensorCores)


def _bce_kernel(logits_ref, targets_ref, out_ref, *,
                rows_valid, block_rows, blocks_per_part, need_mask):
    i = pl.program_id(1)   # inner ("arbitrary") block index within a part

    @pl.when(i == 0)
    def _():
        out_ref[...] = jnp.zeros_like(out_ref)

    x = logits_ref[...].astype(jnp.float32)
    t = targets_ref[...].astype(jnp.float32)

    # BCE(sigmoid(x), t) via the stable log-sigmoid identity:
    #   log p     = min(x, 0) - log(1 + exp(-|x|))
    #   log (1-p) = -max(x, 0) - log(1 + exp(-|x|))
    # -> one exp + one log per element (EUP), clamped at -100 like PyTorch.
    sp = jnp.log(1.0 + jnp.exp(-jnp.abs(x)))
    log_p = jnp.maximum(jnp.minimum(x, 0.0) - sp, -100.0)
    log_1mp = jnp.maximum(-jnp.maximum(x, 0.0) - sp, -100.0)
    loss = -(t * log_p + (1.0 - t) * log_1mp)

    def accumulate(v):
        if block_rows % SUB == 0:
            # (block_rows,128) -> (block_rows/8, 8, 128); leading-axis sum is
            # pure VPU vreg adds into the single (8,128) accumulator vreg.
            out_ref[...] += v.reshape(-1, SUB, LANE).sum(axis=0)
        else:
            # Tiny single-block case (rows < 8 or not a multiple of 8): one
            # cross-sublane reduce into sublane 0 of the accumulator.
            out_ref[0:1, :] += jnp.sum(v, axis=0, keepdims=True)

    if need_mask:
        p = pl.program_id(0)
        gblk = p * blocks_per_part + i            # logical global block id
        is_full = (gblk + 1) * block_rows <= rows_valid

        @pl.when(is_full)
        def _():
            accumulate(loss)

        @pl.when(jnp.logical_not(is_full))
        def _():
            # Partial last block, and fully-masked phantom blocks when the
            # block count does not split evenly across parts. jnp.where (not
            # multiply) so garbage rows (possibly NaN/Inf) cannot propagate.
            row = gblk * block_rows + jax.lax.broadcasted_iota(
                jnp.int32, loss.shape, 0)
            accumulate(jnp.where(row < rows_valid, loss, 0.0))
    else:
        accumulate(loss)


def binary_cross_entropy_loss_2d(logits, targets):
    """mean BCE of sigmoid(logits) vs targets (PyTorch BinaryCrossEntropyLoss2d)."""
    assert logits.shape == targets.shape
    n = int(logits.size)
    assert n > 0

    lf = jnp.ravel(logits)   # torch .view(-1) order for contiguous NCHW
    tf = jnp.ravel(targets)

    # Pad only when n is not lane-aligned (rare; needed for the (rows,128)
    # view). Pad values have ~zero loss (logit=+100 -> p~1, target=1), so no
    # element mask is required for them.
    rem = n % LANE
    if rem:
        pad = LANE - rem
        lf = jnp.pad(lf, (0, pad), constant_values=100.0)
        tf = jnp.pad(tf, (0, pad), constant_values=1.0)
    rows = (n + (LANE - rem) % LANE) // LANE

    lf = lf.reshape(rows, LANE)
    tf = tf.reshape(rows, LANE)

    if rows <= TARGET_BLOCK_ROWS:
        block_rows = rows                 # full-extent block (any row count ok)
    else:
        block_rows = TARGET_BLOCK_ROWS    # multiple of 8 (and 16 for bf16)

    blocks_total = pl.cdiv(rows, block_rows)
    num_parts = NUM_PARTS if blocks_total >= NUM_PARTS else 1
    blocks_per_part = pl.cdiv(blocks_total, num_parts)
    phantom = num_parts * blocks_per_part != blocks_total
    need_mask = (rows % block_rows != 0) or phantom

    if phantom:
        last = blocks_total - 1
        # Clamp phantom block indices onto the last real block: no OOB DMA;
        # the kernel masks their contribution to exactly zero.
        in_idx = lambda p, i: (jnp.minimum(p * blocks_per_part + i, last), 0)
    else:
        in_idx = lambda p, i: (p * blocks_per_part + i, 0)

    partials = pl.pallas_call(
        functools.partial(
            _bce_kernel,
            rows_valid=rows,
            block_rows=block_rows,
            blocks_per_part=blocks_per_part,
            need_mask=need_mask,
        ),
        out_shape=jax.ShapeDtypeStruct((num_parts * SUB, LANE), jnp.float32),
        grid_spec=pltpu.PrefetchScalarGridSpec(
            num_scalar_prefetch=0,
            grid=(num_parts, blocks_per_part),
            in_specs=[
                pl.BlockSpec((block_rows, LANE), in_idx),
                pl.BlockSpec((block_rows, LANE), in_idx),
            ],
            out_specs=pl.BlockSpec((SUB, LANE), lambda p, i: (p, 0)),
        ),
        compiler_params=pltpu.CompilerParams(
            dimension_semantics=("parallel", "arbitrary"),
        ),
    )(lf, tf)

    # One tiny cross-lane reduce over <= num_parts x (8,128) partial sums.
    return jnp.sum(partials) / n


if __name__ == "__main__":
    key = jax.random.PRNGKey(0)
    keys = jax.random.split(key, 8)

    def reference(logits, targets):
        # PyTorch semantics: BCELoss(sigmoid(x), t), mean, log clamped at -100.
        p = jax.nn.sigmoid(logits.astype(jnp.float32))
        t = targets.astype(jnp.float32)
        return jnp.mean(
            -(t * jnp.maximum(jnp.log(p), -100.0)
              + (1.0 - t) * jnp.maximum(jnp.log(1.0 - p), -100.0)))

    # 1) Small NCHW segmentation-style inputs (single full-extent block).
    logits = jax.random.normal(keys[0], (2, 4, 16, 16), dtype=jnp.float32)
    targets = jax.random.uniform(keys[1], (2, 4, 16, 16), dtype=jnp.float32)
    loss = jax.block_until_ready(binary_cross_entropy_loss_2d(logits, targets))
    ref = reference(logits, targets)
    assert jnp.allclose(loss, ref, rtol=1e-5, atol=1e-6), (loss, ref)

    # 2) Mid-size single-block shape (rows = 1056 <= 4096).
    logits2 = jax.random.normal(keys[2], (2, 4, 132, 128), dtype=jnp.float32)
    targets2 = (jax.random.uniform(keys[3], (2, 4, 132, 128)) > 0.5).astype(jnp.float32)
    loss2 = jax.block_until_ready(binary_cross_entropy_loss_2d(logits2, targets2))
    ref2 = reference(logits2, targets2)
    assert jnp.allclose(loss2, ref2, rtol=1e-4, atol=1e-6), (loss2, ref2)

    # 3) Multi-block: rows = 8256 -> 3 blocks of 4096 split across the 2-part
    #    parallel axis (partial last block + one masked phantom block).
    logits3 = jax.random.normal(keys[4], (2, 4, 1032, 128), dtype=jnp.float32)
    targets3 = (jax.random.uniform(keys[5], (2, 4, 1032, 128)) > 0.5).astype(jnp.float32)
    loss3 = jax.block_until_ready(binary_cross_entropy_loss_2d(logits3, targets3))
    ref3 = reference(logits3, targets3)
    assert jnp.allclose(loss3, ref3, rtol=1e-4, atol=1e-6), (loss3, ref3)

    # 4) Non-lane-aligned element count (pad fallback + tiny-block accumulate).
    logits4 = jax.random.normal(keys[6], (2, 3, 7, 5), dtype=jnp.float32)
    targets4 = jax.random.uniform(keys[7], (2, 3, 7, 5), dtype=jnp.float32)
    loss4 = jax.block_until_ready(binary_cross_entropy_loss_2d(logits4, targets4))
    ref4 = reference(logits4, targets4)
    assert jnp.allclose(loss4, ref4, rtol=1e-5, atol=1e-6), (loss4, ref4)

    # 5) bf16 inputs (half the HBM bytes); kernel upcasts to f32 internally.
    logits5 = logits.astype(jnp.bfloat16)
    targets5 = (jax.random.uniform(keys[3], (2, 4, 16, 16)) > 0.5).astype(jnp.bfloat16)
    loss5 = jax.block_until_ready(binary_cross_entropy_loss_2d(logits5, targets5))
    ref5 = reference(logits5, targets5)
    assert jnp.allclose(loss5, ref5, rtol=1e-4, atol=1e-6), (loss5, ref5)

    print("KERNEL_OK")
</pallas_src>

<mosaic_0001>
module attributes {stable_mosaic.version = 11 : i64} {
  func.func @_bce_kernel(%arg0: i32, %arg1: i32, %arg2: memref<16x128xf32, #tpu.memory_space<vmem>>, %arg3: memref<16x128xf32, #tpu.memory_space<vmem>>, %arg4: memref<8x128xf32, #tpu.memory_space<vmem>>) attributes {dimension_semantics = [#tpu.dimension_semantics<parallel>, #tpu.dimension_semantics<arbitrary>], iteration_bounds = array<i64: 1, 1>, scalar_prefetch = 0 : i64, scratch_operands = 0 : i64, tpu.core_type = #tpu.core_type<tc>, window_params = [{transform_indices = @transform_0, window_bounds = array<i64: 16, 128>}, {transform_indices = @transform_1, window_bounds = array<i64: 16, 128>}, {transform_indices = @transform_2, window_bounds = array<i64: 8, 128>}]} {
    %c0_i32 = arith.constant 0 : i32
    %0 = arith.cmpi eq, %arg1, %c0_i32 : i32
    %1 = arith.extui %0 : i1 to i32
    %c0_i32_0 = arith.constant 0 : i32
    %2 = arith.cmpi ne, %1, %c0_i32_0 : i32
    scf.if %2 {
      %cst_17 = arith.constant 0.000000e+00 : f32
      %36 = vector.broadcast %cst_17 : f32 to vector<8x128xf32>
      %c0_18 = arith.constant 0 : index
      %c0_19 = arith.constant 0 : index
      %37 = vector.load %arg4[%c0_18, %c0_19] : memref<8x128xf32, #tpu.memory_space<vmem>>, vector<8x128xf32>
      tpu.vector_store %arg4[%c0_18, %c0_19], %36 {strides = array<i32>} : memref<8x128xf32, #tpu.memory_space<vmem>>, vector<8x128xf32>,
    } else {
    }
    %c0 = arith.constant 0 : index
    %c0_1 = arith.constant 0 : index
    %3 = vector.load %arg2[%c0, %c0_1] : memref<16x128xf32, #tpu.memory_space<vmem>>, vector<16x128xf32>
    %c0_2 = arith.constant 0 : index
    %c0_3 = arith.constant 0 : index
    %4 = vector.load %arg3[%c0_2, %c0_3] : memref<16x128xf32, #tpu.memory_space<vmem>>, vector<16x128xf32>
    %5 = math.absf %3 : vector<16x128xf32>
    %cst = arith.constant 0.000000e+00 : f32
    %6 = vector.broadcast %cst : f32 to vector<16x128xf32>
    %7 = arith.subf %6, %5 : vector<16x128xf32>
    %8 = math.exp %7 : vector<16x128xf32>
    %cst_4 = arith.constant 1.000000e+00 : f32
    %9 = vector.broadcast %cst_4 : f32 to vector<16x128xf32>
    %10 = arith.addf %9, %8 : vector<16x128xf32>
    %11 = math.log %10 : vector<16x128xf32>
    %cst_5 = arith.constant 0.000000e+00 : f32
    %12 = vector.broadcast %cst_5 : f32 to vector<16x128xf32>
    %13 = arith.minimumf %3, %12 : vector<16x128xf32>
    %14 = arith.subf %13, %11 : vector<16x128xf32>
    %cst_6 = arith.constant -1.000000e+02 : f32
    %15 = vector.broadcast %cst_6 : f32 to vector<16x128xf32>
    %16 = arith.maximumf %14, %15 : vector<16x128xf32>
    %cst_7 = arith.constant 0.000000e+00 : f32
    %17 = vector.broadcast %cst_7 : f32 to vector<16x128xf32>
    %18 = arith.maximumf %3, %17 : vector<16x128xf32>
    %cst_8 = arith.constant 0.000000e+00 : f32
    %19 = vector.broadcast %cst_8 : f32 to vector<16x128xf32>
    %20 = arith.subf %19, %18 : vector<16x128xf32>
    %21 = arith.subf %20, %11 : vector<16x128xf32>
    %cst_9 = arith.constant -1.000000e+02 : f32
    %22 = vector.broadcast %cst_9 : f32 to vector<16x128xf32>
    %23 = arith.maximumf %21, %22 : vector<16x128xf32>
    %24 = arith.mulf %4, %16 : vector<16x128xf32>
    %cst_10 = arith.constant 1.000000e+00 : f32
    %25 = vector.broadcast %cst_10 : f32 to vector<16x128xf32>
    %26 = arith.subf %25, %4 : vector<16x128xf32>
    %27 = arith.mulf %26, %23 : vector<16x128xf32>
    %28 = arith.addf %24, %27 : vector<16x128xf32>
    %cst_11 = arith.constant 0.000000e+00 : f32
    %29 = vector.broadcast %cst_11 : f32 to vector<16x128xf32>
    %30 = arith.subf %29, %28 : vector<16x128xf32>
    %c0_12 = arith.constant 0 : index
    %c0_13 = arith.constant 0 : index
    %31 = vector.load %arg4[%c0_12, %c0_13] : memref<8x128xf32, #tpu.memory_space<vmem>>, vector<8x128xf32>
    %32 = vector.shape_cast %30 : vector<16x128xf32> to vector<2x8x128xf32>
    %cst_14 = arith.constant dense<0.000000e+00> : vector<8x128xf32>
    %33 = vector.multi_reduction <add>, %32, %cst_14 [0] : vector<2x8x128xf32> to vector<8x128xf32>
    %34 = arith.addf %31, %33 : vector<8x128xf32>
    %c0_15 = arith.constant 0 : index
    %c0_16 = arith.constant 0 : index
    %35 = vector.load %arg4[%c0_15, %c0_16] : memref<8x128xf32, #tpu.memory_space<vmem>>, vector<8x128xf32>
    tpu.vector_store %arg4[%c0_15, %c0_16], %34 {strides = array<i32>} : memref<8x128xf32, #tpu.memory_space<vmem>>, vector<8x128xf32>,
    return
  }
  func.func @transform_0(%arg0: i32, %arg1: i32) -> (i32, i32) {
    %c1_i32 = arith.constant 1 : i32
    %0 = arith.muli %arg0, %c1_i32 : i32
    %1 = arith.addi %0, %arg1 : i32
    %c0_i32 = arith.constant 0 : i32
    %c0_i32_0 = arith.constant 0 : i32
    return %1, %c0_i32 : i32, i32
  }
  func.func @transform_1(%arg0: i32, %arg1: i32) -> (i32, i32) {
    %c1_i32 = arith.constant 1 : i32
    %0 = arith.muli %arg0, %c1_i32 : i32
    %1 = arith.addi %0, %arg1 : i32
    %c0_i32 = arith.constant 0 : i32
    %c0_i32_0 = arith.constant 0 : i32
    return %1, %c0_i32 : i32, i32
  }
  func.func @transform_2(%arg0: i32, %arg1: i32) -> (i32, i32) {
    %c0_i32 = arith.constant 0 : i32
    %c0_i32_0 = arith.constant 0 : i32
    return %arg0, %c0_i32 : i32, i32
  }
}

</mosaic_0001>

<llo_original>
// kernel: tpu_custom_call.1
$region0: #{tpu_custom_call.1}
  #allocation0 [shape = 'u32[]', space=smem, size = 0x4, offset = 0x4, fixed_abs, tag = 'smem constant byte address 0x4 - core index']
  #allocation1 [shape = 'u32[144,128]{1,0:T(1,128)}', space=vmem, size = 0x12000, scoped, tag = 'internal scratch']
  %s0 = inlined_call_operand.hbm [shape: f32[16,128], index: 0, kind: input, shape index: {}]
  %s1 = inlined_call_operand.hbm [shape: f32[16,128], index: 1, kind: input, shape index: {}]
  %s2 = inlined_call_operand.hbm [shape: f32[8,128], index: 2, kind: output, shape index: {}]
  %s3 = sld [smem:[#allocation0]]
  $region30: #{tpu_custom_call.1} parent=0
    _
  %s5 = ssub.s32 1, %s3
  %s6 = scalar_select 0, %s5, %s3
  $region1: #{tpu_custom_call.1} parent=0
    #allocation2 [shape = 'u8[8192]{0}', space=vmem, size = 0x2000, scoped, tag = 'input window, operand 0, single buffered']
    #allocation3 [shape = 's32[1]{0}', space=sflag, size = 0x4, scoped, tag = 'scoped memory for tpu_custom_call.1']
    #allocation4 [shape = 's32[1]{0}', space=sflag, size = 0x4, scoped, tag = 'scoped memory for tpu_custom_call.1']
    #allocation5 [shape = 'u8[8192]{0}', space=vmem, size = 0x2000, scoped, tag = 'input window, operand 1, single buffered']
    #allocation6 [shape = 's32[1]{0}', space=sflag, size = 0x4, scoped, tag = 'scoped memory for tpu_custom_call.1']
    #allocation7 [shape = 'u8[4096]{0}', space=vmem, size = 0x1000, scoped, tag = 'output window, operand 0, single buffered']
    %7 = vsyncpa [#allocation3], 0
    %8 = vsyncpa [#allocation6], 0
    %9 = vsyncpa [#allocation4], 0
    // Predicated region
    $region2: #{tpu_custom_call.1} parent=1 // pred_check
      _
    $region3: #{tpu_custom_call.1} parent=1 // pred_check_branch
      %11 = sbr.rel (0) target = $region5
    $region4: #{tpu_custom_call.1} parent=1 // pred_region
      %s12 = sadd.s32 0, 0
      %s13 = smul.u32 2, %s12
      %s15 = ssub.s32 256, 256
      %16 = vsyncadd [#allocation3], %s15
      %s17 = smul.addr %s13, 128
      %s18 = scalar_lea.hbm %s0, %s17
      %s19 = sshll.u32 [#allocation2], 4
      %s20 = int_to_ptr.vmem [resolvable:$true] %s19
      %25 = dma.hbm_to_vmem [thread:$0]  %s18, 256, %s20, [#allocation3], 128, 128, 8
    $region5: #{tpu_custom_call.1} parent=1 // pred_fallthru
      _
    // Predicated region
    $region6: #{tpu_custom_call.1} parent=1 // pred_check
      _
    $region7: #{tpu_custom_call.1} parent=1 // pred_check_branch
      %27 = sbr.rel (0) target = $region9
    $region8: #{tpu_custom_call.1} parent=1 // pred_region
      %s28 = sadd.s32 0, 0
      %s29 = smul.u32 2, %s28
      %s31 = ssub.s32 256, 256
      %32 = vsyncadd [#allocation6], %s31
      %s33 = smul.addr %s29, 128
      %s34 = scalar_lea.hbm %s1, %s33
      %s35 = sshll.u32 [#allocation5], 4
      %s36 = int_to_ptr.vmem [resolvable:$true] %s35
      %41 = dma.hbm_to_vmem [thread:$0]  %s34, 256, %s36, [#allocation6], 128, 128, 8
    $region9: #{tpu_custom_call.1} parent=1 // pred_fallthru
      _
    // Predicated region
    $region10: #{tpu_custom_call.1} parent=1 // pred_check
      _
    $region11: #{tpu_custom_call.1} parent=1 // pred_check_branch
      %43 = sbr.rel (0) target = $region13
    $region12: #{tpu_custom_call.1} parent=1 // pred_region
      %44 = dma.done [#allocation3], 256
    $region13: #{tpu_custom_call.1} parent=1 // pred_fallthru
      _
    // Predicated region
    $region14: #{tpu_custom_call.1} parent=1 // pred_check
      _
    $region15: #{tpu_custom_call.1} parent=1 // pred_check_branch
      %46 = sbr.rel (0) target = $region17
    $region16: #{tpu_custom_call.1} parent=1 // pred_region
      %47 = dma.done [#allocation6], 256
    $region17: #{tpu_custom_call.1} parent=1 // pred_fallthru
      _
    %s48 = sadd.s32 0, 0
    %s49 = smul.u32 2, %s48
    %s50 = sadd.s32 0, 0
    %s51 = smul.u32 2, %s50
    %p52 = scmp.eq.s32.totalorder 0, 0
    // Predicated region
    $region18: #{tpu_custom_call.1} parent=1 // pred_check
      %p53 = pneg %p52
    $region19: #{tpu_custom_call.1} parent=1 // pred_check_branch
      %55 = sbr.rel (%p53) target = $region21
    $region20: #{tpu_custom_call.1} parent=1 // pred_region
      %56 = vst [vmem:[#allocation7] sm:$0xff] 0.0
    $region21: #{tpu_custom_call.1} parent=1 // pred_fallthru
      _
    %v57 = vld [vmem:[#allocation2] sm:$0xff]
    %v58 = vld [vmem:[#allocation2 + $0x8] sm:$0xff]
    %v59 = vld [vmem:[#allocation5] sm:$0xff]
    %v60 = vld [vmem:[#allocation5 + $0x8] sm:$0xff]
    %v61 = vand.u32 2147483647, %v57
    %v62 = vand.u32 2147483647, %v58
    %v63 = vsub.f32 0.0, %v61
    %v64 = vsub.f32 0.0, %v62
    %v65 = vmul.f32 %v63, 1.442695
    %v66 = vpow.pop %v65
    %v67 = vmul.f32 %v64, 1.442695
    %v68 = vpow.pop %v67
    %v69 = vadd.f32 %v66, 1.0
    %v70 = vadd.f32 %v68, 1.0
    %v71 = vlog2.pop %v69
    %v72 = vmul.f32 %v71, 0.6931472
    %v73 = vlog2.pop %v70
    %v74 = vmul.f32 %v73, 0.6931472
    %v75 = vmin.f32 %v57, 0.0
    %v76 = vmin.f32 %v58, 0.0
    %v77 = vsub.f32 %v75, %v72
    %v78 = vsub.f32 %v76, %v74
    %v79 = vmax.f32 %v77, -100.0
    %v80 = vmax.f32 %v78, -100.0
    %v81 = vmax.f32 %v57, 0.0
    %v82 = vmax.f32 %v58, 0.0
    %v83 = vsub.f32 0.0, %v81
    %v84 = vsub.f32 0.0, %v82
    %v85 = vsub.f32 %v83, %v72
    %v86 = vsub.f32 %v84, %v74
    %v87 = vmax.f32 %v85, -100.0
    %v88 = vmax.f32 %v86, -100.0
    %v89 = vmul.f32 %v59, %v79
    %v90 = vmul.f32 %v60, %v80
    %v91 = vsub.f32 1.0, %v59
    %v92 = vsub.f32 1.0, %v60
    %v93 = vmul.f32 %v91, %v87
    %v94 = vmul.f32 %v92, %v88
    %v95 = vadd.f32 %v89, %v93
    %v96 = vadd.f32 %v90, %v94
    %v97 = vsub.f32 0.0, %v95
    %v98 = vsub.f32 0.0, %v96
    %v99 = vld [vmem:[#allocation7] sm:$0xff]
    %v100 = vadd.f32 %v97, %v98
    %v101 = vadd.f32 %v99, %v100
    %102 = vst [vmem:[#allocation7] sm:$0xff] %v101
    // Predicated region
    $region22: #{tpu_custom_call.1} parent=1 // pred_check
      _
    $region23: #{tpu_custom_call.1} parent=1 // pred_check_branch
      %104 = sbr.rel (0) target = $region25
    $region24: #{tpu_custom_call.1} parent=1 // pred_region
      %s106 = ssub.s32 128, 128
      %107 = vsyncadd [#allocation4], %s106
      %s109 = sshll.u32 [#allocation7], 4
      %s110 = int_to_ptr.vmem [resolvable:$true] %s109
      %112 = dma.vmem_to_hbm [thread:$0]  %s110, 128, %s2, [#allocation4]
    $region25: #{tpu_custom_call.1} parent=1 // pred_fallthru
      _
    // Predicated region
    $region26: #{tpu_custom_call.1} parent=1 // pred_check
      _
    $region27: #{tpu_custom_call.1} parent=1 // pred_check_branch
      %114 = sbr.rel (0) target = $region29
    $region28: #{tpu_custom_call.1} parent=1 // pred_region
      %115 = dma.done [#allocation4], 128
    $region29: #{tpu_custom_call.1} parent=1 // pred_fallthru
      _
    %116 = vsyncpa [#allocation3], 1
    %117 = vsyncpa [#allocation6], 1
    %118 = vsyncpa [#allocation4], 1

</llo_original>
